<compile_context>
chip_gen: v7x
topology: tpu7x:2x2x1
jax: 0.10.0
libtpu: 0.0.40
codegen_flags: <defaults>
</compile_context>

<pallas_src>
import jax
import jax.numpy as jnp
from jax.experimental import pallas as pl
from jax.experimental.pallas import tpu as pltpu


def ser_kernel(x_ref, w_ref, b_ref, o_ref):
    # bf16 operands on the MXU, f32 accumulate; softmax epilogue entirely in f32.
    logits = jnp.dot(
        x_ref[...], w_ref[...], preferred_element_type=jnp.float32
    ) + b_ref[...]
    m = jnp.max(logits, axis=1, keepdims=True)
    e = jnp.exp(logits - m)
    denom = jnp.sum(e, axis=1, keepdims=True)
    # Exact divide (not approx reciprocal): kernel is HBM-write-bound so the VALU
    # divide is hidden, and row sums stay normalized to f32 rounding.
    probs = e / denom
    # Only the real class lanes go back to HBM (padded lanes are exactly 0 anyway).
    o_ref[...] = probs[:, : o_ref.shape[-1]].astype(o_ref.dtype)


def ser_forward(x, w, b, *, tb=1024):
    """x: [B, F] f32 segment features; w: [F, C]; b: [1, C].

    Returns softmax(x @ w + b, axis=1): [B, C] f32 per-segment class probs.
    tb: segment-axis tile (multiple of 16). 1024 default for real workloads;
    it is clamped down for tiny batches.
    """
    B, F = x.shape
    C = w.shape[1]

    # ---- lane-dense class axis for the MXU: pad C up to a multiple of 128 ----
    Cp = ((C + 127) // 128) * 128

    # ---- batch tile: multiple of 16 (bf16 sublane packing), never larger than
    # the 16-rounded batch so tiny inputs aren't over-padded ----
    tb = max(16, (tb // 16) * 16)
    tb = min(tb, ((B + 15) // 16) * 16)
    Bp = ((B + tb - 1) // tb) * tb

    # Cast first, pad once (single fused bf16 pad; no extra f32 HBM passes).
    x_bf = jnp.pad(x.astype(jnp.bfloat16), ((0, Bp - B), (0, 0)))
    w_bf = jnp.pad(w.astype(jnp.bfloat16), ((0, 0), (0, Cp - C)))
    # Padded classes get a huge negative bias -> exp underflows to exactly 0,
    # so softmax over the 128 padded lanes == softmax over the real C classes.
    b_p = jnp.full((1, Cp), -1e30, jnp.float32).at[:, :C].set(
        b.astype(jnp.float32).reshape(1, C))

    grid = (Bp // tb,)
    flops = 2 * Bp * F * Cp
    bytes_accessed = x_bf.size * 2 + w_bf.size * 2 + b_p.size * 4 + Bp * C * 4

    out = pl.pallas_call(
        ser_kernel,
        out_shape=jax.ShapeDtypeStruct((Bp, C), jnp.float32),
        grid_spec=pltpu.PrefetchScalarGridSpec(
            num_scalar_prefetch=0,
            grid=grid,
            in_specs=[
                # x: blocked over the segment axis (pipelined / megacore-parallel).
                pl.BlockSpec((tb, F), lambda i: (i, 0)),
                # w, b: constant index map -> VMEM-resident, DMA'd once.
                pl.BlockSpec((F, Cp), lambda i: (0, 0)),
                pl.BlockSpec((1, Cp), lambda i: (0, 0)),
            ],
            # Narrow f32 output block: last dim equals the full array dim (C),
            # so only C*4 bytes per row are written back to HBM.
            out_specs=pl.BlockSpec((tb, C), lambda i: (i, 0)),
        ),
        compiler_params=pltpu.CompilerParams(
            dimension_semantics=("parallel",),
            # Headroom-safe on all generations (v7x physical VMEM is 64 MiB/TC).
            vmem_limit_bytes=32 * 1024 * 1024,
        ),
        cost_estimate=pl.CostEstimate(
            flops=flops,
            transcendentals=Bp * Cp,
            bytes_accessed=bytes_accessed,
        ),
    )(x_bf, w_bf, b_p)

    # Strip batch padding only (no padded-class slab to re-read).
    return out[:B]


def context_split_synthetic(key, duration, feat_dim):
    """Python-side re-creation of SER.context_split without librosa.

    Produces deterministic per-segment feature vectors (stand-in for raw 3s
    audio chunks fed to the backbone) and the `weight` list of segment
    lengths, matching the original control flow.
    """
    step = 3
    is_segment = False
    if duration > 3.5:
        is_segment = True
        n_full = int(duration // step)
        n_seg = n_full + 1
        lens = [float(step)] * n_full + [duration - n_full * step]
    else:
        n_seg = 1
        lens = [duration]
    segments = jax.random.normal(key, (n_seg, feat_dim), dtype=jnp.float32)
    return is_segment, segments, lens


if __name__ == "__main__":
    key = jax.random.PRNGKey(0)

    # Small synthetic configuration consistent with the module's intent:
    # snet_config ~ {'in_channels':1, 'hidden_layer':..., 'classes':8}
    feat_dim = 128   # per-segment feature dimension (backbone stand-in input)
    classes = 8      # snet_config['classes']

    # Several synthetic "audio files" -> 34+22+1+16+30 = 103 segments total,
    # giving a multi-step grid at the demo tile size.
    durations = [100.2, 64.4, 3.1, 45.9, 88.7]
    seg_list, weight = [], []
    for d in durations:
        key, sub = jax.random.split(key)
        _, segs, lens = context_split_synthetic(sub, d, feat_dim)
        seg_list.append(segs)
        weight.extend(lens)
    segments = jnp.concatenate(seg_list, axis=0)   # [103, 128]

    key, k_w, k_b = jax.random.split(key, 3)
    # Deterministic "checkpoint" parameters for the backbone stand-in.
    w = jax.random.normal(k_w, (feat_dim, classes), dtype=jnp.float32) * 0.05
    b = jax.random.normal(k_b, (1, classes), dtype=jnp.float32) * 0.01

    # tb=64 -> a multi-step, pipelined, megacore-splittable grid at demo size;
    # real SER batches would use the tb=1024 default.
    probs = ser_forward(segments, w, b, tb=64)
    probs = jax.block_until_ready(probs)

    # Reference check (plain JAX, same bf16 operand rounding).
    logits_ref = jnp.dot(
        segments.astype(jnp.bfloat16), w.astype(jnp.bfloat16),
        preferred_element_type=jnp.float32) + b
    ref = jax.nn.softmax(logits_ref, axis=1)

    assert probs.shape == (segments.shape[0], classes)
    assert jnp.allclose(probs, ref, atol=2e-3, rtol=2e-2)
    assert jnp.allclose(jnp.sum(probs, axis=1), 1.0, atol=1e-3)
    assert len(weight) == segments.shape[0]

    print("KERNEL_OK")
</pallas_src>

<mosaic_0001>
module attributes {stable_mosaic.version = 11 : i64} {
  func.func @ser_kernel(%arg0: i32, %arg1: memref<64x128xbf16, #tpu.memory_space<vmem>>, %arg2: memref<128x128xbf16, #tpu.memory_space<vmem>>, %arg3: memref<1x128xf32, #tpu.memory_space<vmem>>, %arg4: memref<64x8xf32, #tpu.memory_space<vmem>>) attributes {dimension_semantics = [#tpu.dimension_semantics<parallel>], iteration_bounds = array<i64: 2>, scalar_prefetch = 0 : i64, scratch_operands = 0 : i64, tpu.core_type = #tpu.core_type<tc>, window_params = [{transform_indices = @transform_0, window_bounds = array<i64: 64, 128>}, {pipeline_mode = #tpu.pipeline_mode<synchronous>, transform_indices = @transform_1, window_bounds = array<i64: 128, 128>}, {pipeline_mode = #tpu.pipeline_mode<synchronous>, transform_indices = @transform_2, window_bounds = array<i64: 1, 128>}, {transform_indices = @transform_3, window_bounds = array<i64: 64, 8>}]} {
    %c0 = arith.constant 0 : index
    %c0_0 = arith.constant 0 : index
    %0 = vector.load %arg1[%c0, %c0_0] : memref<64x128xbf16, #tpu.memory_space<vmem>>, vector<64x128xbf16>
    %c0_1 = arith.constant 0 : index
    %c0_2 = arith.constant 0 : index
    %1 = vector.load %arg2[%c0_1, %c0_2] : memref<128x128xbf16, #tpu.memory_space<vmem>>, vector<128x128xbf16>
    %cst = arith.constant dense<0.000000e+00> : vector<64x128xf32>
    %2 = tpu.matmul %0, %1, %cst {dimension_numbers = #tpu.dot_dimension_numbers<[1], [0], [0], [1], [0, 0, 1, 1], [], []>} : vector<64x128xbf16>, vector<128x128xbf16>, vector<64x128xf32> -> vector<64x128xf32>
    %c0_3 = arith.constant 0 : index
    %c0_4 = arith.constant 0 : index
    %3 = vector.load %arg3[%c0_3, %c0_4] : memref<1x128xf32, #tpu.memory_space<vmem>>, vector<1x128xf32>
    %4 = vector.broadcast %3 : vector<1x128xf32> to vector<64x128xf32>
    %5 = arith.addf %2, %4 : vector<64x128xf32>
    %cst_5 = arith.constant dense<0xFF800000> : vector<64xf32>
    %6 = vector.multi_reduction <maximumf>, %5, %cst_5 [1] : vector<64x128xf32> to vector<64xf32>
    %7 = vector.shape_cast %6 : vector<64xf32> to vector<64x1xf32>
    %8 = vector.broadcast %7 : vector<64x1xf32> to vector<64x128xf32>
    %9 = arith.subf %5, %8 : vector<64x128xf32>
    %10 = math.exp %9 : vector<64x128xf32>
    %cst_6 = arith.constant dense<0.000000e+00> : vector<64xf32>
    %11 = vector.multi_reduction <add>, %10, %cst_6 [1] : vector<64x128xf32> to vector<64xf32>
    %12 = vector.shape_cast %11 : vector<64xf32> to vector<64x1xf32>
    %13 = vector.broadcast %12 : vector<64x1xf32> to vector<64x128xf32>
    %14 = arith.divf %10, %13 : vector<64x128xf32>
    %15 = vector.extract_strided_slice %14 {offsets = [0, 0], sizes = [64, 8], strides = [1, 1]} : vector<64x128xf32> to vector<64x8xf32>
    %c0_7 = arith.constant 0 : index
    %c0_8 = arith.constant 0 : index
    %16 = vector.load %arg4[%c0_7, %c0_8] : memref<64x8xf32, #tpu.memory_space<vmem>>, vector<64x8xf32>
    tpu.vector_store %arg4[%c0_7, %c0_8], %15 {strides = array<i32>} : memref<64x8xf32, #tpu.memory_space<vmem>>, vector<64x8xf32>,
    return
  }
  func.func @transform_0(%arg0: i32) -> (i32, i32) {
    %c0_i32 = arith.constant 0 : i32
    %c0_i32_0 = arith.constant 0 : i32
    return %arg0, %c0_i32 : i32, i32
  }
  func.func @transform_1(%arg0: i32) -> (i32, i32) {
    %c0_i32 = arith.constant 0 : i32
    %c0_i32_0 = arith.constant 0 : i32
    %c0_i32_1 = arith.constant 0 : i32
    return %c0_i32, %c0_i32_0 : i32, i32
  }
  func.func @transform_2(%arg0: i32) -> (i32, i32) {
    %c0_i32 = arith.constant 0 : i32
    %c0_i32_0 = arith.constant 0 : i32
    %c0_i32_1 = arith.constant 0 : i32
    return %c0_i32, %c0_i32_0 : i32, i32
  }
  func.func @transform_3(%arg0: i32) -> (i32, i32) {
    %c0_i32 = arith.constant 0 : i32
    %c0_i32_0 = arith.constant 0 : i32
    return %arg0, %c0_i32 : i32, i32
  }
}

</mosaic_0001>

<llo_original>
// kernel: tpu_custom_call.1
$region0: #{tpu_custom_call.1}
  #allocation0 [shape = 'u32[]', space=smem, size = 0x4, offset = 0x4, fixed_abs, tag = 'smem constant byte address 0x4 - core index']
  #allocation1 [shape = 'u32[144,128]{1,0:T(1,128)}', space=vmem, size = 0x12000, scoped, tag = 'internal scratch']
  %s0 = inlined_call_operand.hbm [shape: bf16[128,128], index: 0, kind: input, shape index: {}]
  %s1 = inlined_call_operand.hbm [shape: bf16[128,128], index: 1, kind: input, shape index: {}]
  %s2 = inlined_call_operand.vmem [shape: f32[1,128], index: 2, kind: input, shape index: {}]
  %s3 = inlined_call_operand.vmem [shape: f32[128,8], index: 3, kind: output, shape index: {}]
  %s4 = sld [smem:[#allocation0]]
  $region53: #{tpu_custom_call.1} parent=0
    _
  %s6 = ssub.s32 1, %s4
  %s7 = scalar_select 0, %s6, %s4
  $region1: #{tpu_custom_call.1} parent=0
    #allocation2 [shape = 'u8[32768]{0}', space=vmem, size = 0x8000, scoped, tag = 'input window, operand 0']
    #allocation3 [shape = 's32[2]{0}', space=sflag, size = 0x8, scoped, tag = 'scoped memory for tpu_custom_call.1']
    #allocation4 [shape = 'u8[32768]{0}', space=vmem, size = 0x8000, scoped, tag = 'input window, operand 1, single buffered']
    #allocation5 [shape = 's32[1]{0}', space=sflag, size = 0x4, scoped, tag = 'scoped memory for tpu_custom_call.1']
    %8 = vsyncpa [#allocation3], 0
    %s9 = scalar_lea.sflag [#allocation3], 1
    %10 = vsyncpa %s9, 0
    %11 = vsyncpa [#allocation5], 0
    loop: start=0, step=1, limit=4
    $region2: #{tpu_custom_call.1} parent=1 // loop_pre_header
      _
    $region3: #{tpu_custom_call.1} parent=1 // loop_header
      %s13 = sphi 0, %s17
      %p14 = scmp.ge.s32.totalorder %s13, 4
      %s23 = sphi 0, %s25
      %s26 = sphi 0, %s23
      %s27 = sphi 0, %s26
      %s43 = sphi 0, %s27
      %s47 = sphi 0, %s47
      %s49 = sphi 0, %s47
      %s50 = sphi 0, %s49
      %s64 = sphi 0, %s50
      %s68 = sphi 0, %s68
      %s70 = sphi 0, %s68
      %s71 = sphi 0, %s70
      %s85 = sphi 0, %s71
      %s91 = sphi 0, %s93
      %s94 = sphi 0, %s91
      %s95 = sphi 0, %s94
      %s111 = sphi 0, %s95
    $region4: #{tpu_custom_call.1} parent=1 // loop_header_branch
      %16 = sbr.rel (%p14) target = $region8
    $region5: #{tpu_custom_call.1} parent=1 // loop_body
      %s18 = ssub.s32 %s13, 1
      %s19 = ssub.s32 %s13, 2
      %s20 = sadd.s32 %s13, 1
      %s21 = ssub.s32 %s13, %s20
      %p22 = scmp.eq.s32.totalorder %s21, 0
      %s24 = sadd.s32 %s23, 1
      %s25 = scalar_select %p22, %s23, %s24
      %p28 = pneg %p22
      %p29 = scmp.eq.s32.totalorder %s13, 1
      %p30 = por %p28, %p29
      %p31 = scmp.ne.s32.totalorder %s23, %s26
      %p32 = scmp.eq.s32.totalorder %s13, 0
      %p33 = por %p31, %p32
      %p34 = scmp.ne.s32.totalorder %s23, %s26
      %p35 = scmp.eq.s32.totalorder %s18, 1
      %p36 = por %p34, %p35
      %p37 = scmp.ne.s32.totalorder %s26, %s27
      %p38 = scmp.eq.s32.totalorder %s18, 0
      %p39 = por %p37, %p38
      %p40 = scmp.ne.s32.totalorder %s26, %s27
      %p41 = scmp.eq.s32.totalorder %s19, 1
      %p42 = por %p40, %p41
      %p44 = scmp.ne.s32.totalorder %s27, %s43
      %p45 = scmp.eq.s32.totalorder %s19, 0
      %p46 = por %p44, %p45
      %s48 = sadd.s32 %s47, 1
      %p51 = scmp.eq.s32.totalorder %s13, 1
      %p52 = scmp.ne.s32.totalorder %s47, %s49
      %p53 = scmp.eq.s32.totalorder %s13, 0
      %p54 = por %p52, %p53
      %p55 = scmp.ne.s32.totalorder %s47, %s49
      %p56 = scmp.eq.s32.totalorder %s18, 1
      %p57 = por %p55, %p56
      %p58 = scmp.ne.s32.totalorder %s49, %s50
      %p59 = scmp.eq.s32.totalorder %s18, 0
      %p60 = por %p58, %p59
      %p61 = scmp.ne.s32.totalorder %s49, %s50
      %p62 = scmp.eq.s32.totalorder %s19, 1
      %p63 = por %p61, %p62
      %p65 = scmp.ne.s32.totalorder %s50, %s64
      %p66 = scmp.eq.s32.totalorder %s19, 0
      %p67 = por %p65, %p66
      %s69 = sadd.s32 %s68, 1
      %p72 = scmp.eq.s32.totalorder %s13, 1
      %p73 = scmp.ne.s32.totalorder %s68, %s70
      %p74 = scmp.eq.s32.totalorder %s13, 0
      %p75 = por %p73, %p74
      %p76 = scmp.ne.s32.totalorder %s68, %s70
      %p77 = scmp.eq.s32.totalorder %s18, 1
      %p78 = por %p76, %p77
      %p79 = scmp.ne.s32.totalorder %s70, %s71
      %p80 = scmp.eq.s32.totalorder %s18, 0
      %p81 = por %p79, %p80
      %p82 = scmp.ne.s32.totalorder %s70, %s71
      %p83 = scmp.eq.s32.totalorder %s19, 1
      %p84 = por %p82, %p83
      %p86 = scmp.ne.s32.totalorder %s71, %s85
      %p87 = scmp.eq.s32.totalorder %s19, 0
      %p88 = por %p86, %p87
      %s89 = ssub.s32 %s13, %s20
      %p90 = scmp.eq.s32.totalorder %s89, 0
      %s92 = sadd.s32 %s91, 1
      %s93 = scalar_select %p90, %s91, %s92
      %p96 = pneg %p90
      %p97 = scmp.eq.s32.totalorder %s13, 1
      %p98 = por %p96, %p97
      %p99 = scmp.ne.s32.totalorder %s91, %s94
      %p100 = scmp.eq.s32.totalorder %s13, 0
      %p101 = por %p99, %p100
      %p102 = scmp.ne.s32.totalorder %s91, %s94
      %p103 = scmp.eq.s32.totalorder %s18, 1
      %p104 = por %p102, %p103
      %p105 = scmp.ne.s32.totalorder %s94, %s95
      %p106 = scmp.eq.s32.totalorder %s18, 0
      %p107 = por %p105, %p106
      %p108 = scmp.ne.s32.totalorder %s94, %s95
      %p109 = scmp.eq.s32.totalorder %s19, 1
      %p110 = por %p108, %p109
      %p112 = scmp.ne.s32.totalorder %s95, %s111
      %p113 = scmp.eq.s32.totalorder %s19, 0
      %p114 = por %p112, %p113
      %p115 = scmp.le.s32.totalorder 1, %s13
      %p116 = scmp.lt.s32.totalorder %s13, 3
      %p117 = pnand %p115, %p116
      %p118 = pneg %p117
      // Predicated region
      $region9: #{tpu_custom_call.1} parent=5 // pred_check
        _
      $region10: #{tpu_custom_call.1} parent=5 // pred_check_branch
        %120 = sbr.rel (%p117) target = $region12
      $region11: #{tpu_custom_call.1} parent=5 // pred_region
        %s121 = ssub.s32 %s13, 1
        // Predicated region
        $region13: #{tpu_custom_call.1} parent=11 // pred_check
          %p122 = pneg %p60
        $region14: #{tpu_custom_call.1} parent=11 // pred_check_branch
          %124 = sbr.rel (%p122) target = $region16
        $region15: #{tpu_custom_call.1} parent=11 // pred_region
          %s126 = ssub.s32 1024, 1024
          %127 = vsyncadd [#allocation5], %s126
          %s128 = sshll.u32 [#allocation4], 4
          %s129 = int_to_ptr.vmem [resolvable:$true] %s128
          %134 = dma.hbm_to_vmem [thread:$0]  %s1, 1024, %s129, [#allocation5], 64, 64, 4
        $region16: #{tpu_custom_call.1} parent=11 // pred_fallthru
          _
        // Predicated region
        $region17: #{tpu_custom_call.1} parent=11 // pred_check
          %p135 = pneg %p81
        $region18: #{tpu_custom_call.1} parent=11 // pred_check_branch
          %137 = sbr.rel (%p135) target = $region20
        $region19: #{tpu_custom_call.1} parent=11 // pred_region
          _
        $region20: #{tpu_custom_call.1} parent=11 // pred_fallthru
          _
      $region12: #{tpu_custom_call.1} parent=5 // pred_fallthru
        _
      %p138 = scmp.lt.s32.totalorder %s13, 2
      // Predicated region
      $region21: #{tpu_custom_call.1} parent=5 // pred_check
        %p139 = pneg %p138
      $region22: #{tpu_custom_call.1} parent=5 // pred_check_branch
        %141 = sbr.rel (%p139) target = $region24
      $region23: #{tpu_custom_call.1} parent=5 // pred_region
        // Predicated region
        $region25: #{tpu_custom_call.1} parent=23 // pred_check
          %p142 = pneg %p33
        $region26: #{tpu_custom_call.1} parent=23 // pred_check_branch
          %144 = sbr.rel (%p142) target = $region28
        $region27: #{tpu_custom_call.1} parent=23 // pred_region
          %s145 = sand.u32 %s23, 1
          %s146 = scalar_lea.sflag [#allocation3], %s145
          %s147 = sand.u32 %s23, 1
          %s148 = smul.addr %s147, 32
          %s149 = scalar_lea.vmem [#allocation2], %s148
          %s150 = smul.u32 8, %s13
          %s152 = ssub.s32 512, 512
          %153 = vsyncadd %s146, %s152
          %s154 = smul.addr %s150, 64
          %s155 = scalar_lea.hbm %s0, %s154
          %s156 = sshll.u32 %s149, 4
          %s157 = int_to_ptr.vmem [resolvable:$true] %s156
          %162 = dma.hbm_to_vmem [thread:$0]  %s155, 512, %s157, %s146, 64, 64, 4
        $region28: #{tpu_custom_call.1} parent=23 // pred_fallthru
          _
      $region24: #{tpu_custom_call.1} parent=5 // pred_fallthru
        _
      %p163 = scmp.le.s32.totalorder 1, %s13
      %p164 = scmp.lt.s32.totalorder %s13, 3
      %p165 = pnand %p163, %p164
      %p166 = pneg %p165
      // Predicated region
      $region29: #{tpu_custom_call.1} parent=5 // pred_check
        _
      $region30: #{tpu_custom_call.1} parent=5 // pred_check_branch
        %168 = sbr.rel (%p165) target = $region32
      $region31: #{tpu_custom_call.1} parent=5 // pred_region
        %s169 = ssub.s32 %s13, 1
        %s170 = sand.u32 %s26, 1
        %s171 = scalar_lea.sflag [#allocation3], %s170
        %s172 = sand.u32 %s26, 1
        %s173 = smul.addr %s172, 32
        %s174 = scalar_lea.vmem [#allocation2], %s173
        // Predicated region
        $region33: #{tpu_custom_call.1} parent=31 // pred_check
          %p175 = pneg %p39
        $region34: #{tpu_custom_call.1} parent=31 // pred_check_branch
          %177 = sbr.rel (%p175) target = $region36
        $region35: #{tpu_custom_call.1} parent=31 // pred_region
          %178 = dma.done %s171, 512
        $region36: #{tpu_custom_call.1} parent=31 // pred_fallthru
          _
        // Predicated region
        $region37: #{tpu_custom_call.1} parent=31 // pred_check
          %p179 = pneg %p60
        $region38: #{tpu_custom_call.1} parent=31 // pred_check_branch
          %181 = sbr.rel (%p179) target = $region40
        $region39: #{tpu_custom_call.1} parent=31 // pred_region
          %182 = dma.done [#allocation5], 1024
        $region40: #{tpu_custom_call.1} parent=31 // pred_fallthru
          _
        %s183 = sand.u32 %s26, 1
        %s184 = scalar_lea.sflag [#allocation3], %s183
        %s185 = sand.u32 %s26, 1
        %s186 = smul.addr %s185, 32
        %s187 = scalar_lea.vmem [#allocation2], %s186
        %p188 = pneg %p39
        %p189 = pneg %p36
        %p190 = pneg %p60
        %p191 = pneg %p57
        %p192 = pneg %p81
        %p193 = pneg %p78
        %p194 = pneg %p107
        %p195 = pneg %p104
        %s196 = smul.u32 8, %s18
        %p197 = scmp.lt.s32.totalorder %s196, 15
        %s198 = scalar_select %p197, %s196, 15
        %s199 = smul.addr %s198, 8
        %s200 = scalar_lea.vmem %s3, %s199
        %s201 = smul.u32 8, %s18
        %s202 = smul.u32 8, %s18
        %p203 = scmp.lt.s32.totalorder %s202, 15
        %s204 = scalar_select %p203, %s202, 15
        %s205 = smul.addr %s204, 8
        %s206 = scalar_lea.vmem %s3, %s205
        %s207 = smul.u32 8, %s18
        %v209 = vld [vmem:[%s174] sm:$0xf]
        %v210 = vld [vmem:[%s174 + $0x4] sm:$0xf]
        %v211 = vld [vmem:[%s174 + $0x8] sm:$0xf]
        %v212 = vld [vmem:[%s174 + $0xc] sm:$0xf]
        %v213 = vld [vmem:[%s174 + $0x10] sm:$0xf]
        %v214 = vld [vmem:[%s174 + $0x14] sm:$0xf]
        %v215 = vld [vmem:[%s174 + $0x18] sm:$0xf]
        %v216 = vld [vmem:[%s174 + $0x1c] sm:$0xf]
        %v217 = vld [vmem:[#allocation4] sm:$0xf]
        %v218 = vld [vmem:[#allocation4 + $0x4] sm:$0xf]
        %v219 = vld [vmem:[#allocation4 + $0x8] sm:$0xf]
        %v220 = vld [vmem:[#allocation4 + $0xc] sm:$0xf]
        %v221 = vld [vmem:[#allocation4 + $0x10] sm:$0xf]
        %v222 = vld [vmem:[#allocation4 + $0x14] sm:$0xf]
        %v223 = vld [vmem:[#allocation4 + $0x18] sm:$0xf]
        %v224 = vld [vmem:[#allocation4 + $0x1c] sm:$0xf]
        %v225 = vld [vmem:[#allocation4 + $0x20] sm:$0xf]
        %v226 = vld [vmem:[#allocation4 + $0x24] sm:$0xf]
        %v227 = vld [vmem:[#allocation4 + $0x28] sm:$0xf]
        %v228 = vld [vmem:[#allocation4 + $0x2c] sm:$0xf]
        %v229 = vld [vmem:[#allocation4 + $0x30] sm:$0xf]
        %v230 = vld [vmem:[#allocation4 + $0x34] sm:$0xf]
        %v231 = vld [vmem:[#allocation4 + $0x38] sm:$0xf]
        %v232 = vld [vmem:[#allocation4 + $0x3c] sm:$0xf]
        %v233 = vld [vmem:[%s2] sm:$0x1]
        %v235 = vlaneseq
        %v236 = vshrl.u32 %v235, 7
        %v237 = vsub.s32 0, %v236
        %v238 = vrot.slane %v233, %v237
        %v248 = vunpack.c.l.b16 %v209
        %v249 = vunpack.c.l.b16 %v210
        %v250 = vunpack.c.l.b16 %v211
        %v251 = vunpack.c.l.b16 %v212
        %v252 = vunpack.c.l.b16 %v213
        %v253 = vunpack.c.l.b16 %v214
        %v254 = vunpack.c.l.b16 %v215
        %v255 = vunpack.c.l.b16 %v216
        %v256 = vpack.c.b16 %v249, %v248
        %v257 = vpack.c.b16 %v251, %v250
        %v258 = vpack.c.b16 %v253, %v252
        %v259 = vpack.c.b16 %v255, %v254
        %v280 = vunpack.c.l.b16 %v217
        %v281 = vunpack.c.l.b16 %v218
        %v282 = vunpack.c.l.b16 %v219
        %v283 = vunpack.c.l.b16 %v220
        %v284 = vunpack.c.l.b16 %v221
        %v285 = vunpack.c.l.b16 %v222
        %v286 = vunpack.c.l.b16 %v223
        %v287 = vunpack.c.l.b16 %v224
        %v288 = vunpack.c.l.b16 %v225
        %v289 = vunpack.c.l.b16 %v226
        %v290 = vunpack.c.l.b16 %v227
        %v291 = vunpack.c.l.b16 %v228
        %v292 = vunpack.c.l.b16 %v229
        %v293 = vunpack.c.l.b16 %v230
        %v294 = vunpack.c.l.b16 %v231
        %v295 = vunpack.c.l.b16 %v232
        %v296 = vpack.c.b16 %v281, %v280
        %v297 = vpack.c.b16 %v283, %v282
        %v298 = vpack.c.b16 %v285, %v284
        %v299 = vpack.c.b16 %v287, %v286
        %v300 = vpack.c.b16 %v289, %v288
        %v301 = vpack.c.b16 %v291, %v290
        %v302 = vpack.c.b16 %v293, %v292
        %v303 = vpack.c.b16 %v295, %v294
        %312 = vmatprep.subr.bf16.mxu0 0
        %313 = vmatpush1.bf16.msra.mxu0 %v296
        %314 = vmatprep.subr.bf16.mxu0 0
        %315 = vmatpush1.bf16.msra.mxu0 %v297
        %316 = vmatprep.subr.bf16.mxu0 0
        %317 = vmatpush1.bf16.msra.mxu0 %v298
        %318 = vmatprep.subr.bf16.mxu0 0
        %319 = vmatpush1.bf16.msra.mxu0 %v299
        %320 = vmatprep.subr.bf16.mxu0 0
        %321 = vmatpush1.bf16.msra.mxu0 %v300
        %322 = vmatprep.subr.bf16.mxu0 0
        %323 = vmatpush1.bf16.msra.mxu0 %v301
        %324 = vmatprep.subr.bf16.mxu0 0
        %325 = vmatpush1.bf16.msra.mxu0 %v302
        %326 = vmatprep.subr.bf16.mxu0 0
        %327 = vmatpush1.bf16.msra.mxu0 %v303
        %328 = vmatprep.subr.bf16.mxu0 0
        %329 = vmatpush1.bf16.msra.mxu0 0
        %330 = vmatprep.subr.bf16.mxu0 0
        %331 = vmatpush1.bf16.msra.mxu0 0
        %332 = vmatprep.subr.bf16.mxu0 0
        %333 = vmatpush1.bf16.msra.mxu0 0
        %334 = vmatprep.subr.bf16.mxu0 0
        %335 = vmatpush1.bf16.msra.mxu0 0
        %336 = vmatprep.subr.bf16.mxu0 0
        %337 = vmatpush1.bf16.msra.mxu0 0
        %338 = vmatprep.subr.bf16.mxu0 0
        %339 = vmatpush1.bf16.msra.mxu0 0
        %340 = vmatprep.subr.bf16.mxu0 0
        %341 = vmatpush1.bf16.msra.mxu0 0
        %342 = vmatprep.subr.bf16.mxu0 0
        %343 = vmatpush1.bf16.msra.mxu0 0
        %344 = vmatprep.mubr.bf16.mxu0 0
        %345 = vmatmul.mubr.bf16.gmra.mrb[0].mxu0 %v256
        %v346 = vpop.f32.mrb[0].mxu0
        %v347 = vadd.f32 %v238, %v346
        %v348 = vpop.f32.mrb[0].mxu0
        %v349 = vpop.f32.mrb[0].mxu0
        %v350 = vadd.f32 %v238, %v349
        %v351 = vpop.f32.mrb[0].mxu0
        %352 = vmatprep.mubr.bf16.mxu0 0
        %353 = vmatmul.mubr.bf16.gmra.mrb[0].mxu0 %v257
        %v354 = vpop.f32.mrb[0].mxu0
        %v355 = vadd.f32 %v238, %v354
        %v356 = vpop.f32.mrb[0].mxu0
        %v357 = vpop.f32.mrb[0].mxu0
        %v358 = vadd.f32 %v238, %v357
        %v359 = vpop.f32.mrb[0].mxu0
        %360 = vmatprep.mubr.bf16.mxu0 0
        %361 = vmatmul.mubr.bf16.gmra.mrb[0].mxu0 %v258
        %v362 = vpop.f32.mrb[0].mxu0
        %v363 = vadd.f32 %v238, %v362
        %v364 = vpop.f32.mrb[0].mxu0
        %v365 = vpop.f32.mrb[0].mxu0
        %v366 = vadd.f32 %v238, %v365
        %v367 = vpop.f32.mrb[0].mxu0
        %368 = vmatprep.mubr.bf16.mxu0 0
        %369 = vmatmul.mubr.bf16.gmra.mrb[0].mxu0 %v259
        %v370 = vpop.f32.mrb[0].mxu0
        %v371 = vadd.f32 %v238, %v370
        %v372 = vpop.f32.mrb[0].mxu0
        %v373 = vpop.f32.mrb[0].mxu0
        %v374 = vadd.f32 %v238, %v373
        %v375 = vpop.f32.mrb[0].mxu0
        %376 = vdwg.mxu0
        %377 = vmax.xlane.f32.xlu0 %v347
        %v378 = vpop.xlane.xlu0 %377
        %379 = vmax.xlane.f32.xlu0 %v350
        %v380 = vpop.xlane.xlu0 %379
        %381 = vmax.xlane.f32.xlu0 %v355
        %v382 = vpop.xlane.xlu0 %381
        %383 = vmax.xlane.f32.xlu0 %v358
        %v384 = vpop.xlane.xlu0 %383
        %385 = vmax.xlane.f32.xlu0 %v363
        %v386 = vpop.xlane.xlu0 %385
        %387 = vmax.xlane.f32.xlu0 %v366
        %v388 = vpop.xlane.xlu0 %387
        %389 = vmax.xlane.f32.xlu0 %v371
        %v390 = vpop.xlane.xlu0 %389
        %391 = vmax.xlane.f32.xlu0 %v374
        %v392 = vpop.xlane.xlu0 %391
        %v393 = vsub.f32 %v347, %v378
        %v394 = vsub.f32 %v350, %v380
        %v395 = vsub.f32 %v355, %v382
        %v396 = vsub.f32 %v358, %v384
        %v397 = vsub.f32 %v363, %v386
        %v398 = vsub.f32 %v366, %v388
        %v399 = vsub.f32 %v371, %v390
        %v400 = vsub.f32 %v374, %v392
        %v401 = vmul.f32 %v393, 1.442695
        %v402 = vpow.pop %v401
        %v403 = vmul.f32 %v394, 1.442695
        %v404 = vpow.pop %v403
        %v405 = vmul.f32 %v395, 1.442695
        %v406 = vpow.pop %v405
        %v407 = vmul.f32 %v396, 1.442695
        %v408 = vpow.pop %v407
        %v409 = vmul.f32 %v397, 1.442695
        %v410 = vpow.pop %v409
        %v411 = vmul.f32 %v398, 1.442695
        %v412 = vpow.pop %v411
        %v413 = vmul.f32 %v399, 1.442695
        %v414 = vpow.pop %v413
        %v415 = vmul.f32 %v400, 1.442695
        %v416 = vpow.pop %v415
        %417 = vadd.xlane.f32.xlu0 %v402
        %v418 = vpop.xlane.xlu0 %417
        %419 = vadd.xlane.f32.xlu0 %v404
        %v420 = vpop.xlane.xlu0 %419
        %421 = vadd.xlane.f32.xlu0 %v406
        %v422 = vpop.xlane.xlu0 %421
        %423 = vadd.xlane.f32.xlu0 %v408
        %v424 = vpop.xlane.xlu0 %423
        %425 = vadd.xlane.f32.xlu0 %v410
        %v426 = vpop.xlane.xlu0 %425
        %427 = vadd.xlane.f32.xlu0 %v412
        %v428 = vpop.xlane.xlu0 %427
        %429 = vadd.xlane.f32.xlu0 %v414
        %v430 = vpop.xlane.xlu0 %429
        %431 = vadd.xlane.f32.xlu0 %v416
        %v432 = vpop.xlane.xlu0 %431
        %v433 = vrcp.pop %v418
        %v434 = vmul.f32 %v402, %v433
        %v435 = vrcp.pop %v420
        %v436 = vmul.f32 %v404, %v435
        %v437 = vrcp.pop %v422
        %v438 = vmul.f32 %v406, %v437
        %v439 = vrcp.pop %v424
        %v440 = vmul.f32 %v408, %v439
        %v441 = vrcp.pop %v426
        %v442 = vmul.f32 %v410, %v441
        %v443 = vrcp.pop %v428
        %v444 = vmul.f32 %v412, %v443
        %v445 = vrcp.pop %v430
        %v446 = vmul.f32 %v414, %v445
        %v447 = vrcp.pop %v432
        %v448 = vmul.f32 %v416, %v447
        %vm449 = vcmask 64512
        %450 = vst.msk [vmem:[%s206] sm:$0xff] %vm449, %v434
        %451 = vst.msk [vmem:[%s206 + $0x8] sm:$0xff] %vm449, %v436
        %452 = vst.msk [vmem:[%s206 + $0x10] sm:$0xff] %vm449, %v438
        %453 = vst.msk [vmem:[%s206 + $0x18] sm:$0xff] %vm449, %v440
        %454 = vst.msk [vmem:[%s206 + $0x20] sm:$0xff] %vm449, %v442
        %455 = vst.msk [vmem:[%s206 + $0x28] sm:$0xff] %vm449, %v444
        %456 = vst.msk [vmem:[%s206 + $0x30] sm:$0xff] %vm449, %v446
        %457 = vst.msk [vmem:[%s206 + $0x38] sm:$0xff] %vm449, %v448
        %s458 = smul.u32 8, %s18
        %p459 = scmp.lt.s32.totalorder %s458, 15
        %s460 = scalar_select %p459, %s458, 15
        %s461 = smul.addr %s460, 8
        %s462 = scalar_lea.vmem %s3, %s461
        // Predicated region
        $region41: #{tpu_custom_call.1} parent=31 // pred_check
          %p463 = pneg %p104
        $region42: #{tpu_custom_call.1} parent=31 // pred_check_branch
          %465 = sbr.rel (%p463) target = $region44
        $region43: #{tpu_custom_call.1} parent=31 // pred_region
          %s466 = smul.u32 8, %s18
        $region44: #{tpu_custom_call.1} parent=31 // pred_fallthru
          _
      $region32: #{tpu_custom_call.1} parent=5 // pred_fallthru
        _
      %p467 = scmp.le.s32.totalorder 2, %s13
      // Predicated region
      $region45: #{tpu_custom_call.1} parent=5 // pred_check
        %p468 = pneg %p467
      $region46: #{tpu_custom_call.1} parent=5 // pred_check_branch
        %470 = sbr.rel (%p468) target = $region48
      $region47: #{tpu_custom_call.1} parent=5 // pred_region
        %s471 = ssub.s32 %s13, 2
        // Predicated region
        $region49: #{tpu_custom_call.1} parent=47 // pred_check
          %p472 = pneg %p110
        $region50: #{tpu_custom_call.1} parent=47 // pred_check_branch
          %474 = sbr.rel (%p472) target = $region52
        $region51: #{tpu_custom_call.1} parent=47 // pred_region
          %s475 = smul.u32 8, %s19
          %p476 = scmp.lt.s32.totalorder %s475, 15
          %s477 = scalar_select %p476, %s475, 15
          %s478 = smul.addr %s477, 8
          %s479 = scalar_lea.vmem %s3, %s478
        $region52: #{tpu_custom_call.1} parent=47 // pred_fallthru
          _
      $region48: #{tpu_custom_call.1} parent=5 // pred_fallthru
        _
    $region6: #{tpu_custom_call.1} parent=1 // loop_footer
      %s17 = sadd.s32 1, %s13
    $region7: #{tpu_custom_call.1} parent=1 // loop_footer_branch
      %12 = sbr.rel target = $region3
    $region8: #{tpu_custom_call.1} parent=1 // loop_exit
      _
    %480 = vsyncpa [#allocation3], 1
    %s481 = scalar_lea.sflag [#allocation3], 1
    %482 = vsyncpa %s481, 1
    %483 = vsyncpa [#allocation5], 1

</llo_original>
